<compile_context>
chip_gen: v7x
topology: tpu7x:2x2x1
jax: 0.10.0
libtpu: 0.0.40
codegen_flags: <defaults>
</compile_context>

<pallas_src>
import jax
import jax.numpy as jnp
from jax import lax
from jax.experimental import pallas as pl
from jax.experimental.pallas import tpu as pltpu


def _round_up(x, m):
    return ((x + m - 1) // m) * m


def _unpatch_kernel(w_ref, x_ref, b_ref, o_ref):
    # w_ref: (Cp, Dp)      resident weight (compute dtype, e.g. bf16)
    # x_ref: (1, tn, Dp)   one batch element, tn pixels (compute dtype)
    # b_ref: (Cp, 1)       bias column, f32
    # o_ref: (1, Cp, tn)   channel-major output tile (lane dim = tn -> unmasked stores)
    x = x_ref[0]  # (tn, Dp)
    # (Cp, Dp) x (tn, Dp) contracting on Dp -> (Cp, tn).
    # The kernel is HBM-bandwidth bound, so any XLU transpose Mosaic inserts for the
    # trans-B contraction is hidden under DMA stalls; pl.dot(w, x, trans_b=True) is an
    # equivalent alternative if a bundle dump ever shows exposed vxpose work.
    acc = lax.dot_general(
        w_ref[...], x,
        dimension_numbers=(((1,), (1,)), ((), ())),
        preferred_element_type=jnp.float32,
    )
    o_ref[0] = (acc + b_ref[...]).astype(o_ref.dtype)


def _pick_tn(B, N):
    # Largest lane-dense tile; cap 1024 (~86% of HBM roofline on v6e, half the
    # per-grid-step overhead of 512).
    tn = N if N <= 1024 else 1024
    # Guarantee >= 4 grid steps when the shape allows it so BlockSpec double-buffering
    # overlaps and both v7x TensorCores get work (grid axes are "parallel").
    target_steps = 4
    while B * ((N + tn - 1) // tn) < target_steps:
        new_tn = (tn // 2 // 128) * 128  # keep a 128-multiple (output lane block)
        if new_tn < 128:
            break
        tn = new_tn
    return tn


def unpatch_embedding_forward(
    x, weight, bias, patch_size, *,
    tn=None,
    compute_dtype=None,
    out_dtype=None,
    min_bytes_for_pallas=1 << 20,
):
    """UnpatchEmbedding forward: transpose + view + Conv2d(1x1).

    x:      (B, N, d_model) with N == patch_size**2
    weight: (out_channels, d_model)   (Conv2d 1x1 weight squeezed)
    bias:   (out_channels,)
    returns (B, out_channels, patch_size, patch_size)  (NCHW, like PyTorch)
    """
    B, N, d_model = x.shape
    C = weight.shape[0]
    assert N == patch_size * patch_size
    out_dtype = x.dtype if out_dtype is None else out_dtype

    # Tiny-problem fallback: let XLA fuse a plain einsum (full precision); the custom
    # kernel only pays off at production N / d_model.
    if x.size * x.dtype.itemsize < min_bytes_for_pallas:
        out = jnp.einsum("bnd,od->bon", x, weight) + bias[None, :, None]
        return out.astype(out_dtype).reshape(B, C, patch_size, patch_size)

    # bf16 compute by default for f32 inputs (HBM-BW bound op); f32 accumulation and
    # f32 bias add preserve accuracy of everything except the input rounding.
    if compute_dtype is None:
        compute_dtype = jnp.bfloat16 if x.dtype == jnp.float32 else x.dtype
    compute_dtype = jnp.dtype(compute_dtype)

    # --- tiling -------------------------------------------------------------
    if tn is None:
        tn = _pick_tn(B, N)
    else:
        if tn < N and tn % 128 != 0:
            tn = max(128, (tn // 128) * 128)
        tn = min(tn, N)

    # --- padding to hardware-friendly shapes ---------------------------------
    # C -> multiple of 8  (output-tile sublane dim: avoids half-masked stores)
    # D -> multiple of 128 (x-tile lane dim: avoids masked loads feeding the MXU)
    Cp = _round_up(C, 8)
    Dp = _round_up(d_model, 128)

    xc = x.astype(compute_dtype)
    wc = weight.astype(compute_dtype)
    if Dp != d_model:
        xc = jnp.pad(xc, ((0, 0), (0, 0), (0, Dp - d_model)))
        wc = jnp.pad(wc, ((0, 0), (0, Dp - d_model)))
    bf = bias.astype(jnp.float32)
    if Cp != C:
        wc = jnp.pad(wc, ((0, Cp - C), (0, 0)))
        bf = jnp.pad(bf, ((0, Cp - C),))
    b2d = bf.reshape(Cp, 1)

    # --- VMEM budget: double-buffered x & out tiles + resident weight/bias ----
    cbytes = compute_dtype.itemsize
    obytes = jnp.dtype(out_dtype).itemsize
    vmem_needed = (2 * tn * Dp * cbytes) + (2 * Cp * tn * obytes) \
                  + (Cp * Dp * cbytes) + (Cp * 128 * 4)
    vmem_limit = int(min(64 << 20, max(16 << 20, 2 * vmem_needed)))

    grid = (B, pl.cdiv(N, tn))
    out3 = pl.pallas_call(
        _unpatch_kernel,
        out_shape=jax.ShapeDtypeStruct((B, Cp, N), out_dtype),
        grid_spec=pltpu.PrefetchScalarGridSpec(
            num_scalar_prefetch=0,
            grid=grid,
            in_specs=[
                pl.BlockSpec((Cp, Dp), lambda b, j: (0, 0)),        # weight, resident
                pl.BlockSpec((1, tn, Dp), lambda b, j: (b, j, 0)),  # x tile
                pl.BlockSpec((Cp, 1), lambda b, j: (0, 0)),         # bias, resident
            ],
            out_specs=pl.BlockSpec((1, Cp, tn), lambda b, j: (b, 0, j)),
        ),
        compiler_params=pltpu.CompilerParams(
            dimension_semantics=("parallel", "parallel"),
            vmem_limit_bytes=vmem_limit,
        ),
    )(wc, xc, b2d)

    if Cp != C:
        out3 = out3[:, :C, :]
    # (B, C, N) -> (B, C, ps, ps): contiguous reshape, no transpose, no extra HBM pass.
    return out3.reshape(B, C, patch_size, patch_size)


if __name__ == "__main__":
    # Small shapes consistent with the module: d_model=32, out_channels=4, patch_size=8.
    B, d_model, out_channels, patch_size = 2, 32, 4, 8
    N = patch_size * patch_size

    key = jax.random.PRNGKey(0)
    kx, kw, kb = jax.random.split(key, 3)
    x = jax.random.normal(kx, (B, N, d_model), dtype=jnp.float32)
    # Deterministic synthetic Conv2d(1x1) params ((out_channels, d_model, 1, 1) squeezed).
    weight = jax.random.normal(kw, (out_channels, d_model), dtype=jnp.float32) * 0.05
    bias = jax.random.normal(kb, (out_channels,), dtype=jnp.float32) * 0.05

    # Pure-JAX reference of the exact PyTorch semantics.
    x_t = jnp.transpose(x, (0, 2, 1)).reshape(B, d_model, patch_size, patch_size)
    ref = jnp.einsum("bdhw,od->bohw", x_t, weight) + bias[None, :, None, None]

    # 1) f32 Pallas path (forced past the tiny-shape fallback) vs exact reference.
    out_f32 = unpatch_embedding_forward(
        x, weight, bias, patch_size,
        compute_dtype=jnp.float32, min_bytes_for_pallas=0)
    out_f32 = jax.block_until_ready(out_f32)
    assert out_f32.shape == (B, out_channels, patch_size, patch_size)
    assert jnp.allclose(out_f32, ref, atol=1e-5, rtol=1e-5)

    # 2) bf16-compute Pallas path (production default for f32 inputs) vs a reference
    #    with the same input rounding (f32 accumulation in both).
    out_bf16 = unpatch_embedding_forward(
        x, weight, bias, patch_size,
        compute_dtype=jnp.bfloat16, min_bytes_for_pallas=0)
    out_bf16 = jax.block_until_ready(out_bf16)
    x_b = x.astype(jnp.bfloat16).astype(jnp.float32)
    w_b = weight.astype(jnp.bfloat16).astype(jnp.float32)
    x_bt = jnp.transpose(x_b, (0, 2, 1)).reshape(B, d_model, patch_size, patch_size)
    ref_b = jnp.einsum("bdhw,od->bohw", x_bt, w_b) + bias[None, :, None, None]
    assert jnp.allclose(out_bf16, ref_b, atol=1e-4, rtol=1e-4)

    # 3) Tiny-shape fallback path (plain einsum, full precision) vs exact reference.
    out_fb = unpatch_embedding_forward(x, weight, bias, patch_size)
    out_fb = jax.block_until_ready(out_fb)
    assert jnp.allclose(out_fb, ref, atol=1e-5, rtol=1e-5)

    print("KERNEL_OK")
</pallas_src>

<mosaic_0001>
module attributes {stable_mosaic.version = 11 : i64} {
  func.func @_unpatch_kernel(%arg0: i32, %arg1: i32, %arg2: memref<8x128xf32, #tpu.memory_space<vmem>>, %arg3: memref<1x64x128xf32, #tpu.memory_space<vmem>>, %arg4: memref<8x1xf32, #tpu.memory_space<vmem>>, %arg5: memref<1x8x64xf32, #tpu.memory_space<vmem>>) attributes {dimension_semantics = [#tpu.dimension_semantics<parallel>, #tpu.dimension_semantics<parallel>], iteration_bounds = array<i64: 2, 1>, scalar_prefetch = 0 : i64, scratch_operands = 0 : i64, tpu.core_type = #tpu.core_type<tc>, window_params = [{pipeline_mode = #tpu.pipeline_mode<synchronous>, transform_indices = @transform_0, window_bounds = array<i64: 8, 128>}, {transform_indices = @transform_1, window_bounds = array<i64: 1, 64, 128>}, {pipeline_mode = #tpu.pipeline_mode<synchronous>, transform_indices = @transform_2, window_bounds = array<i64: 8, 1>}, {transform_indices = @transform_3, window_bounds = array<i64: 1, 8, 64>}]} {
    %c0 = arith.constant 0 : index
    %c0_0 = arith.constant 0 : index
    %c0_1 = arith.constant 0 : index
    %0 = vector.load %arg3[%c0, %c0_0, %c0_1] : memref<1x64x128xf32, #tpu.memory_space<vmem>>, vector<1x64x128xf32>
    %1 = vector.shape_cast %0 : vector<1x64x128xf32> to vector<64x128xf32>
    %c0_2 = arith.constant 0 : index
    %c0_3 = arith.constant 0 : index
    %2 = vector.load %arg2[%c0_2, %c0_3] : memref<8x128xf32, #tpu.memory_space<vmem>>, vector<8x128xf32>
    %cst = arith.constant dense<0.000000e+00> : vector<8x64xf32>
    %3 = tpu.matmul %2, %1, %cst {dimension_numbers = #tpu.dot_dimension_numbers<[1], [1], [0], [0], [0, 0, 1, 0], [], []>} : vector<8x128xf32>, vector<64x128xf32>, vector<8x64xf32> -> vector<8x64xf32>
    %c0_4 = arith.constant 0 : index
    %c0_5 = arith.constant 0 : index
    %4 = vector.load %arg4[%c0_4, %c0_5] : memref<8x1xf32, #tpu.memory_space<vmem>>, vector<8x1xf32>
    %5 = vector.broadcast %4 : vector<8x1xf32> to vector<8x64xf32>
    %6 = arith.addf %3, %5 : vector<8x64xf32>
    %c0_6 = arith.constant 0 : index
    %c0_7 = arith.constant 0 : index
    %c0_8 = arith.constant 0 : index
    %7 = vector.load %arg5[%c0_6, %c0_7, %c0_8] : memref<1x8x64xf32, #tpu.memory_space<vmem>>, vector<1x8x64xf32>
    %8 = vector.shape_cast %7 : vector<1x8x64xf32> to vector<8x64xf32>
    %9 = vector.shape_cast %6 : vector<8x64xf32> to vector<1x8x64xf32>
    tpu.vector_store %arg5[%c0_6, %c0_7, %c0_8], %9 {strides = array<i32>} : memref<1x8x64xf32, #tpu.memory_space<vmem>>, vector<1x8x64xf32>,
    return
  }
  func.func @transform_0(%arg0: i32, %arg1: i32) -> (i32, i32) {
    %c0_i32 = arith.constant 0 : i32
    %c0_i32_0 = arith.constant 0 : i32
    %c0_i32_1 = arith.constant 0 : i32
    return %c0_i32, %c0_i32_0 : i32, i32
  }
  func.func @transform_1(%arg0: i32, %arg1: i32) -> (i32, i32, i32) {
    %c0_i32 = arith.constant 0 : i32
    %c0_i32_0 = arith.constant 0 : i32
    return %arg0, %arg1, %c0_i32 : i32, i32, i32
  }
  func.func @transform_2(%arg0: i32, %arg1: i32) -> (i32, i32) {
    %c0_i32 = arith.constant 0 : i32
    %c0_i32_0 = arith.constant 0 : i32
    %c0_i32_1 = arith.constant 0 : i32
    return %c0_i32, %c0_i32_0 : i32, i32
  }
  func.func @transform_3(%arg0: i32, %arg1: i32) -> (i32, i32, i32) {
    %c0_i32 = arith.constant 0 : i32
    %c0_i32_0 = arith.constant 0 : i32
    return %arg0, %c0_i32, %arg1 : i32, i32, i32
  }
}

</mosaic_0001>

<llo_original>
// kernel: tpu_custom_call.1
$region0: #{tpu_custom_call.1}
  #allocation0 [shape = 'u32[]', space=smem, size = 0x4, offset = 0x4, fixed_abs, tag = 'smem constant byte address 0x4 - core index']
  #allocation1 [shape = 'u32[144,128]{1,0:T(1,128)}', space=vmem, size = 0x12000, scoped, tag = 'internal scratch']
  %s0 = inlined_call_operand.vmem [shape: f32[8,128], index: 0, kind: input, shape index: {}]
  %s1 = inlined_call_operand.hbm [shape: f32[2,64,128], index: 1, kind: input, shape index: {}]
  %s2 = inlined_call_operand.vmem [shape: f32[8,1], index: 2, kind: input, shape index: {}]
  %s3 = inlined_call_operand.hbm [shape: f32[2,8,64], index: 3, kind: output, shape index: {}]
  %s4 = sld [smem:[#allocation0]]
  $region49: #{tpu_custom_call.1} parent=0
    _
  %s6 = ssub.s32 1, %s4
  %s7 = scalar_select 0, %s6, %s4
  $region1: #{tpu_custom_call.1} parent=0
    #allocation2 [shape = 'u8[65536]{0}', space=vmem, size = 0x10000, scoped, tag = 'input window, operand 1']
    #allocation3 [shape = 's32[2]{0}', space=sflag, size = 0x8, scoped, tag = 'scoped memory for tpu_custom_call.1']
    #allocation4 [shape = 's32[2]{0}', space=sflag, size = 0x8, scoped, tag = 'scoped memory for tpu_custom_call.1']
    #allocation5 [shape = 'u8[8192]{0}', space=vmem, size = 0x2000, scoped, tag = 'output window, operand 0']
    %8 = vsyncpa [#allocation3], 0
    %s9 = scalar_lea.sflag [#allocation3], 1
    %10 = vsyncpa %s9, 0
    %11 = vsyncpa [#allocation4], 0
    %s12 = scalar_lea.sflag [#allocation4], 1
    %13 = vsyncpa %s12, 0
    loop: start=0, step=1, limit=4
    $region2: #{tpu_custom_call.1} parent=1 // loop_pre_header
      _
    $region3: #{tpu_custom_call.1} parent=1 // loop_header
      %s15 = sphi 0, %s19
      %p16 = scmp.ge.s32.totalorder %s15, 4
      %s22 = sphi 0, %s34
      %s23 = sphi 0, %s30
      %s24 = sphi 0, %s22
      %s25 = sphi 0, %s23
      %s26 = sphi 0, %s24
      %s27 = sphi 0, %s25
      %s35 = sphi 0, %s35
      %s37 = sphi 0, %s35
      %s38 = sphi 0, %s37
      %s52 = sphi 0, %s38
      %s60 = sphi 0, %s62
      %s63 = sphi 0, %s60
      %s64 = sphi 0, %s63
      %s80 = sphi 0, %s64
      %s84 = sphi 0, %s84
      %s86 = sphi 0, %s84
      %s87 = sphi 0, %s86
      %s101 = sphi 0, %s87
      %s109 = sphi 0, %s111
      %s112 = sphi 0, %s109
      %s113 = sphi 0, %s112
      %s129 = sphi 0, %s113
    $region4: #{tpu_custom_call.1} parent=1 // loop_header_branch
      %18 = sbr.rel (%p16) target = $region8
    $region5: #{tpu_custom_call.1} parent=1 // loop_body
      %s20 = ssub.s32 %s15, 1
      %s21 = ssub.s32 %s15, 2
      %s28 = sadd.s32 1, %s23
      %p29 = scmp.ge.s32.totalorder %s28, 1
      %s30 = scalar_select %p29, 0, %s28
      %s31 = sadd.s32 1, %s22
      %s32 = scalar_select %p29, %s31, %s22
      %p33 = scmp.ge.s32.totalorder %s32, 2
      %s34 = scalar_select %p33, 0, %s32
      %s36 = sadd.s32 %s35, 1
      %p39 = scmp.eq.s32.totalorder %s15, 1
      %p40 = scmp.ne.s32.totalorder %s35, %s37
      %p41 = scmp.eq.s32.totalorder %s15, 0
      %p42 = por %p40, %p41
      %p43 = scmp.ne.s32.totalorder %s35, %s37
      %p44 = scmp.eq.s32.totalorder %s20, 1
      %p45 = por %p43, %p44
      %p46 = scmp.ne.s32.totalorder %s37, %s38
      %p47 = scmp.eq.s32.totalorder %s20, 0
      %p48 = por %p46, %p47
      %p49 = scmp.ne.s32.totalorder %s37, %s38
      %p50 = scmp.eq.s32.totalorder %s21, 1
      %p51 = por %p49, %p50
      %p53 = scmp.ne.s32.totalorder %s38, %s52
      %p54 = scmp.eq.s32.totalorder %s21, 0
      %p55 = por %p53, %p54
      %s56 = ssub.s32 %s22, %s34
      %s57 = ssub.s32 %s23, %s30
      %s58 = sor.u32 %s56, %s57
      %p59 = scmp.eq.s32.totalorder %s58, 0
      %s61 = sadd.s32 %s60, 1
      %s62 = scalar_select %p59, %s60, %s61
      %p65 = pneg %p59
      %p66 = scmp.eq.s32.totalorder %s15, 1
      %p67 = por %p65, %p66
      %p68 = scmp.ne.s32.totalorder %s60, %s63
      %p69 = scmp.eq.s32.totalorder %s15, 0
      %p70 = por %p68, %p69
      %p71 = scmp.ne.s32.totalorder %s60, %s63
      %p72 = scmp.eq.s32.totalorder %s20, 1
      %p73 = por %p71, %p72
      %p74 = scmp.ne.s32.totalorder %s63, %s64
      %p75 = scmp.eq.s32.totalorder %s20, 0
      %p76 = por %p74, %p75
      %p77 = scmp.ne.s32.totalorder %s63, %s64
      %p78 = scmp.eq.s32.totalorder %s21, 1
      %p79 = por %p77, %p78
      %p81 = scmp.ne.s32.totalorder %s64, %s80
      %p82 = scmp.eq.s32.totalorder %s21, 0
      %p83 = por %p81, %p82
      %s85 = sadd.s32 %s84, 1
      %p88 = scmp.eq.s32.totalorder %s15, 1
      %p89 = scmp.ne.s32.totalorder %s84, %s86
      %p90 = scmp.eq.s32.totalorder %s15, 0
      %p91 = por %p89, %p90
      %p92 = scmp.ne.s32.totalorder %s84, %s86
      %p93 = scmp.eq.s32.totalorder %s20, 1
      %p94 = por %p92, %p93
      %p95 = scmp.ne.s32.totalorder %s86, %s87
      %p96 = scmp.eq.s32.totalorder %s20, 0
      %p97 = por %p95, %p96
      %p98 = scmp.ne.s32.totalorder %s86, %s87
      %p99 = scmp.eq.s32.totalorder %s21, 1
      %p100 = por %p98, %p99
      %p102 = scmp.ne.s32.totalorder %s87, %s101
      %p103 = scmp.eq.s32.totalorder %s21, 0
      %p104 = por %p102, %p103
      %s105 = ssub.s32 %s22, %s34
      %s106 = ssub.s32 %s23, %s30
      %s107 = sor.u32 %s105, %s106
      %p108 = scmp.eq.s32.totalorder %s107, 0
      %s110 = sadd.s32 %s109, 1
      %s111 = scalar_select %p108, %s109, %s110
      %p114 = pneg %p108
      %p115 = scmp.eq.s32.totalorder %s15, 1
      %p116 = por %p114, %p115
      %p117 = scmp.ne.s32.totalorder %s109, %s112
      %p118 = scmp.eq.s32.totalorder %s15, 0
      %p119 = por %p117, %p118
      %p120 = scmp.ne.s32.totalorder %s109, %s112
      %p121 = scmp.eq.s32.totalorder %s20, 1
      %p122 = por %p120, %p121
      %p123 = scmp.ne.s32.totalorder %s112, %s113
      %p124 = scmp.eq.s32.totalorder %s20, 0
      %p125 = por %p123, %p124
      %p126 = scmp.ne.s32.totalorder %s112, %s113
      %p127 = scmp.eq.s32.totalorder %s21, 1
      %p128 = por %p126, %p127
      %p130 = scmp.ne.s32.totalorder %s113, %s129
      %p131 = scmp.eq.s32.totalorder %s21, 0
      %p132 = por %p130, %p131
      %p133 = scmp.le.s32.totalorder 1, %s15
      %p134 = scmp.lt.s32.totalorder %s15, 3
      %p135 = pnand %p133, %p134
      %p136 = pneg %p135
      // Predicated region
      $region9: #{tpu_custom_call.1} parent=5 // pred_check
        _
      $region10: #{tpu_custom_call.1} parent=5 // pred_check_branch
        %138 = sbr.rel (%p135) target = $region12
      $region11: #{tpu_custom_call.1} parent=5 // pred_region
        %s139 = ssub.s32 %s15, 1
        // Predicated region
        $region13: #{tpu_custom_call.1} parent=11 // pred_check
          %p140 = pneg %p48
        $region14: #{tpu_custom_call.1} parent=11 // pred_check_branch
          %142 = sbr.rel (%p140) target = $region16
        $region15: #{tpu_custom_call.1} parent=11 // pred_region
          _
        $region16: #{tpu_custom_call.1} parent=11 // pred_fallthru
          _
        // Predicated region
        $region17: #{tpu_custom_call.1} parent=11 // pred_check
          %p143 = pneg %p97
        $region18: #{tpu_custom_call.1} parent=11 // pred_check_branch
          %145 = sbr.rel (%p143) target = $region20
        $region19: #{tpu_custom_call.1} parent=11 // pred_region
          _
        $region20: #{tpu_custom_call.1} parent=11 // pred_fallthru
          _
      $region12: #{tpu_custom_call.1} parent=5 // pred_fallthru
        _
      %p146 = scmp.lt.s32.totalorder %s15, 2
      // Predicated region
      $region21: #{tpu_custom_call.1} parent=5 // pred_check
        %p147 = pneg %p146
      $region22: #{tpu_custom_call.1} parent=5 // pred_check_branch
        %149 = sbr.rel (%p147) target = $region24
      $region23: #{tpu_custom_call.1} parent=5 // pred_region
        // Predicated region
        $region25: #{tpu_custom_call.1} parent=23 // pred_check
          %p150 = pneg %p70
        $region26: #{tpu_custom_call.1} parent=23 // pred_check_branch
          %152 = sbr.rel (%p150) target = $region28
        $region27: #{tpu_custom_call.1} parent=23 // pred_region
          %s153 = sand.u32 %s60, 1
          %s154 = scalar_lea.sflag [#allocation3], %s153
          %s155 = sand.u32 %s60, 1
          %s156 = smul.addr %s155, 64
          %s157 = scalar_lea.vmem [#allocation2], %s156
          %s158 = smul.u32 8, %s23
          %s160 = ssub.s32 1024, 1024
          %161 = vsyncadd %s154, %s160
          %s162 = smul.addr %s22, 8
          %s163 = sadd.s32 %s158, %s162
          %s164 = smul.addr %s163, 128
          %s165 = scalar_lea.hbm %s1, %s164
          %s166 = sshll.u32 %s157, 4
          %s167 = int_to_ptr.vmem [resolvable:$true] %s166
          %172 = dma.hbm_to_vmem [thread:$0]  %s165, 1024, %s167, %s154, 128, 128, 8
        $region28: #{tpu_custom_call.1} parent=23 // pred_fallthru
          _
      $region24: #{tpu_custom_call.1} parent=5 // pred_fallthru
        _
      %p173 = scmp.le.s32.totalorder 1, %s15
      %p174 = scmp.lt.s32.totalorder %s15, 3
      %p175 = pnand %p173, %p174
      %p176 = pneg %p175
      // Predicated region
      $region29: #{tpu_custom_call.1} parent=5 // pred_check
        _
      $region30: #{tpu_custom_call.1} parent=5 // pred_check_branch
        %178 = sbr.rel (%p175) target = $region32
      $region31: #{tpu_custom_call.1} parent=5 // pred_region
        %s179 = ssub.s32 %s15, 1
        %s180 = sand.u32 %s63, 1
        %s181 = scalar_lea.sflag [#allocation3], %s180
        %s182 = sand.u32 %s63, 1
        %s183 = smul.addr %s182, 64
        %s184 = scalar_lea.vmem [#allocation2], %s183
        // Predicated region
        $region33: #{tpu_custom_call.1} parent=31 // pred_check
          %p185 = pneg %p76
        $region34: #{tpu_custom_call.1} parent=31 // pred_check_branch
          %187 = sbr.rel (%p185) target = $region36
        $region35: #{tpu_custom_call.1} parent=31 // pred_region
          %188 = dma.done %s181, 1024
        $region36: #{tpu_custom_call.1} parent=31 // pred_fallthru
          _
        %p189 = pneg %p48
        %p190 = pneg %p45
        %s191 = sand.u32 %s63, 1
        %s192 = scalar_lea.sflag [#allocation3], %s191
        %s193 = sand.u32 %s63, 1
        %s194 = smul.addr %s193, 64
        %s195 = scalar_lea.vmem [#allocation2], %s194
        %p196 = pneg %p76
        %p197 = pneg %p73
        %p198 = pneg %p97
        %p199 = pneg %p94
        %p200 = pneg %p125
        %p201 = pneg %p122
        %s202 = sand.u32 %s112, 1
        %s203 = scalar_lea.sflag [#allocation4], %s202
        %s204 = sand.u32 %s112, 1
        %s205 = smul.addr %s204, 8
        %s206 = scalar_lea.vmem [#allocation5], %s205
        %s207 = smul.u32 8, %s25
        %v208 = vld [vmem:[%s184] sm:$0xff]
        %v209 = vld [vmem:[%s184 + $0x8] sm:$0xff]
        %v210 = vld [vmem:[%s184 + $0x10] sm:$0xff]
        %v211 = vld [vmem:[%s184 + $0x18] sm:$0xff]
        %v212 = vld [vmem:[%s184 + $0x20] sm:$0xff]
        %v213 = vld [vmem:[%s184 + $0x28] sm:$0xff]
        %v214 = vld [vmem:[%s184 + $0x30] sm:$0xff]
        %v215 = vld [vmem:[%s184 + $0x38] sm:$0xff]
        %v216 = vld [vmem:[%s0] sm:$0xff]
        %v217 = vld [vmem:[%s2] sm:$0xff]
        %219 = vset.pattern.permute.xlu0 0
        %220 = vperm.xlu0 %219, %v217
        %v221 = vpop.permute.xlu0 %220
        %223 = vmatprep.subr.mxu0 0.0
        %224 = vmatpush1.xpose.msra.mxu0 %v208
        %225 = vmatprep.subr.mxu0 0.0
        %226 = vmatpush1.xpose.msra.mxu0 %v209
        %227 = vmatprep.subr.mxu0 0.0
        %228 = vmatpush1.xpose.msra.mxu0 %v210
        %229 = vmatprep.subr.mxu0 0.0
        %230 = vmatpush1.xpose.msra.mxu0 %v211
        %231 = vmatprep.subr.mxu0 0.0
        %232 = vmatpush1.xpose.msra.mxu0 %v212
        %233 = vmatprep.subr.mxu0 0.0
        %234 = vmatpush1.xpose.msra.mxu0 %v213
        %235 = vmatprep.subr.mxu0 0.0
        %236 = vmatpush1.xpose.msra.mxu0 %v214
        %237 = vmatprep.subr.mxu0 0.0
        %238 = vmatpush1.xpose.msra.mxu0 %v215
        %239 = vmatprep.subr.mxu0 0.0
        %240 = vmatpush1.xpose.msra.mxu0 0.0
        %241 = vmatprep.subr.mxu0 0.0
        %242 = vmatpush1.xpose.msra.mxu0 0.0
        %243 = vmatprep.subr.mxu0 0.0
        %244 = vmatpush1.xpose.msra.mxu0 0.0
        %245 = vmatprep.subr.mxu0 0.0
        %246 = vmatpush1.xpose.msra.mxu0 0.0
        %247 = vmatprep.subr.mxu0 0.0
        %248 = vmatpush1.xpose.msra.mxu0 0.0
        %249 = vmatprep.subr.mxu0 0.0
        %250 = vmatpush1.xpose.msra.mxu0 0.0
        %251 = vmatprep.subr.mxu0 0.0
        %252 = vmatpush1.xpose.msra.mxu0 0.0
        %253 = vmatprep.subr.mxu0 0.0
        %254 = vmatpush1.xpose.msra.mxu0 0.0
        %255 = vmatprep.subr.mxu0 0.0
        %256 = vmatpush1.xpose.msra.mxu0 0.0
        %257 = vmatprep.subr.mxu0 0.0
        %258 = vmatpush1.xpose.msra.mxu0 0.0
        %259 = vmatprep.subr.mxu0 0.0
        %260 = vmatpush1.xpose.msra.mxu0 0.0
        %261 = vmatprep.subr.mxu0 0.0
        %262 = vmatpush1.xpose.msra.mxu0 0.0
        %263 = vmatprep.subr.mxu0 0.0
        %264 = vmatpush1.xpose.msra.mxu0 0.0
        %265 = vmatprep.subr.mxu0 0.0
        %266 = vmatpush1.xpose.msra.mxu0 0.0
        %267 = vmatprep.subr.mxu0 0.0
        %268 = vmatpush1.xpose.msra.mxu0 0.0
        %269 = vmatprep.subr.mxu0 0.0
        %270 = vmatpush1.xpose.msra.mxu0 0.0
        %271 = vmatprep.subr.mxu0 0.0
        %272 = vmatpush1.xpose.msra.mxu0 0.0
        %273 = vmatprep.subr.mxu0 0.0
        %274 = vmatpush1.xpose.msra.mxu0 0.0
        %275 = vmatprep.subr.mxu0 0.0
        %276 = vmatpush1.xpose.msra.mxu0 0.0
        %277 = vmatprep.subr.mxu0 0.0
        %278 = vmatpush1.xpose.msra.mxu0 0.0
        %279 = vmatprep.subr.mxu0 0.0
        %280 = vmatpush1.xpose.msra.mxu0 0.0
        %281 = vmatprep.subr.mxu0 0.0
        %282 = vmatpush1.xpose.msra.mxu0 0.0
        %283 = vmatprep.subr.mxu0 0.0
        %284 = vmatpush1.xpose.msra.mxu0 0.0
        %285 = vmatprep.subr.mxu0 0.0
        %286 = vmatpush1.xpose.msra.mxu0 0.0
        %287 = vmatprep.mubr.f32.mxu0 0.0
        %288 = vmatmul.mubr.f32.gmra.mrb[0].mxu0 %v216
        %v289 = vpop.f32.mrb[0].mxu0
        %v290 = vadd.f32 %v221, %v289
        %v291 = vpop.f32.mrb[0].mxu0
        %292 = vdwg.mxu0
        %vm293 = vcmask 523264
        %294 = vst.msk [vmem:[%s206] sm:$0xff] %vm293, %v290
        %s295 = sand.u32 %s112, 1
        %s296 = scalar_lea.sflag [#allocation4], %s295
        %s297 = sand.u32 %s112, 1
        %s298 = smul.addr %s297, 8
        %s299 = scalar_lea.vmem [#allocation5], %s298
        // Predicated region
        $region37: #{tpu_custom_call.1} parent=31 // pred_check
          %p300 = pneg %p122
        $region38: #{tpu_custom_call.1} parent=31 // pred_check_branch
          %302 = sbr.rel (%p300) target = $region40
        $region39: #{tpu_custom_call.1} parent=31 // pred_region
          %s304 = ssub.s32 128, 128
          %305 = vsyncadd %s296, %s304
          %s306 = sadd.s32 %s25, %s24
          %s307 = smul.addr %s306, 128
          %s308 = scalar_lea.hbm %s3, %s307
          %s310 = sshll.u32 %s299, 4
          %s311 = int_to_ptr.vmem [resolvable:$true] %s310
          %313 = dma.vmem_to_hbm [thread:$0]  %s311, 128, %s308, %s296
        $region40: #{tpu_custom_call.1} parent=31 // pred_fallthru
          _
      $region32: #{tpu_custom_call.1} parent=5 // pred_fallthru
        _
      %p314 = scmp.le.s32.totalorder 2, %s15
      // Predicated region
      $region41: #{tpu_custom_call.1} parent=5 // pred_check
        %p315 = pneg %p314
      $region42: #{tpu_custom_call.1} parent=5 // pred_check_branch
        %317 = sbr.rel (%p315) target = $region44
      $region43: #{tpu_custom_call.1} parent=5 // pred_region
        %s318 = ssub.s32 %s15, 2
        // Predicated region
        $region45: #{tpu_custom_call.1} parent=43 // pred_check
          %p319 = pneg %p128
        $region46: #{tpu_custom_call.1} parent=43 // pred_check_branch
          %321 = sbr.rel (%p319) target = $region48
        $region47: #{tpu_custom_call.1} parent=43 // pred_region
          %s322 = sand.u32 %s113, 1
          %s323 = scalar_lea.sflag [#allocation4], %s322
          %s324 = sand.u32 %s113, 1
          %s325 = smul.addr %s324, 8
          %s326 = scalar_lea.vmem [#allocation5], %s325
          %327 = dma.done %s323, 128
        $region48: #{tpu_custom_call.1} parent=43 // pred_fallthru
          _
      $region44: #{tpu_custom_call.1} parent=5 // pred_fallthru
        _
    $region6: #{tpu_custom_call.1} parent=1 // loop_footer
      %s19 = sadd.s32 1, %s15
    $region7: #{tpu_custom_call.1} parent=1 // loop_footer_branch
      %14 = sbr.rel target = $region3
    $region8: #{tpu_custom_call.1} parent=1 // loop_exit
      _
    %328 = vsyncpa [#allocation3], 1
    %s329 = scalar_lea.sflag [#allocation3], 1
    %330 = vsyncpa %s329, 1
    %331 = vsyncpa [#allocation4], 1
    %s332 = scalar_lea.sflag [#allocation4], 1
    %333 = vsyncpa %s332, 1

</llo_original>
